<compile_context>
chip_gen: v7x
topology: tpu7x:2x2x1
jax: 0.10.0
libtpu: 0.0.40
codegen_flags: <defaults>
</compile_context>

<pallas_src>
import numpy as np
import jax
import jax.numpy as jnp
from jax.experimental import pallas as pl
from jax.experimental.pallas import tpu as pltpu

_EPS = 1e-5


# ------------------------- elementwise helpers -------------------------

def _sigmoid_ref(v):
    return 1.0 / (1.0 + jnp.exp(-v))


def _swish_ref(v):
    return v * _sigmoid_ref(v)


def _sigmoid_k(v):
    # exp + reciprocal both go to the EUP slot (frees the VALU, esp. on v5e).
    return pl.reciprocal(1.0 + jnp.exp(-v), approx=False)


def _swish_k(v):
    return v * _sigmoid_k(v)


# ------------------------- small host helpers -------------------------

def _pick_row_tile(n, target, quantum):
    """Largest divisor of n that is <= target and a multiple of `quantum`
    (or n itself). Keeps BlockSpec second-minor dims tile-aligned."""
    t = min(n, target)
    while t > 1:
        if n % t == 0 and (t == n or t % quantum == 0):
            return t
        t -= 1
    return n


def _cparams():
    return pltpu.CompilerParams(
        dimension_semantics=("parallel",),
        vmem_limit_bytes=32 * 1024 * 1024,
    )


def _bn_scale_bias(psum, psumsq, count, gamma, beta):
    """Combine per-tile partial sums into BN scale/bias (batch statistics)."""
    s = jnp.sum(psum, axis=(0, 1))
    ss = jnp.sum(psumsq, axis=(0, 1))
    mean = s / count
    var = ss / count - mean * mean
    scale = gamma.reshape(-1) * jax.lax.rsqrt(var + _EPS)
    bias = beta.reshape(-1) - mean * scale
    return scale.reshape(1, -1), bias.reshape(1, -1)


# ------------------------- Pallas kernels -------------------------

def expand_stats_kernel(x_ref, w_ref, psum_ref, psumsq_ref):
    # x_ref: (TR, C_in) bf16 ; w_ref: (C_in, C_exp) bf16
    # Partial BN0 statistics for this row tile; h itself is not stored.
    h = jnp.dot(x_ref[...], w_ref[...], preferred_element_type=jnp.float32)
    psum_ref[...] = jnp.sum(h, axis=0).reshape(1, 1, -1)
    psumsq_ref[...] = jnp.sum(h * h, axis=0).reshape(1, 1, -1)


def make_expand_dw_kernel(ksize, pad, H, W):
    def kernel(x_ref, we_ref, s0_ref, b0_ref, wdw_ref,
               d_ref, psum_ref, psumsq_ref, pad_sc, acc_sc):
        # x_ref: (1,H,W,C_in) bf16 ; we_ref: (C_in,C_exp) bf16
        # s0/b0: (1,C_exp) f32 (BN0 folded) ; wdw: (k*k, C_exp) f32
        C_in = x_ref.shape[-1]
        C = acc_sc.shape[-1]

        # 1x1 expand conv recomputed here (BN0 stats came from stage 1) so the
        # expanded activation never makes an HBM round trip.
        x = x_ref[...].reshape(H * W, C_in)
        h = jnp.dot(x, we_ref[...], preferred_element_type=jnp.float32)
        a = _swish_k(h * s0_ref[...] + b0_ref[...])
        a = a.reshape(1, H, W, C)

        # Zero-padded halo built entirely in VMEM (replaces XLA jnp.pad).
        pad_sc[...] = jnp.zeros_like(pad_sc)
        pad_sc[:, pad:pad + H, pad:pad + W, :] = a

        # Depthwise KxK conv: K*K shifted multiply-adds into a VMEM scratch
        # accumulator (keeps vreg pressure / VMEM peak low).
        acc_sc[...] = jnp.zeros_like(acc_sc)
        wdw = wdw_ref[...]
        for dy in range(ksize):
            for dx in range(ksize):
                acc_sc[...] += pad_sc[:, dy:dy + H, dx:dx + W, :] * wdw[dy * ksize + dx]

        d = acc_sc[...]
        d_ref[...] = d
        # Per-batch partial BN1 statistics (combined on host).
        psum_ref[...] = jnp.sum(d, axis=(0, 1, 2)).reshape(1, 1, C)
        psumsq_ref[...] = jnp.sum(d * d, axis=(0, 1, 2)).reshape(1, 1, C)
    return kernel


def make_se_project_kernel(H, W):
    def kernel(d_ref, s1_ref, b1_ref, w1_ref, sb1_ref, w2_ref, sb2_ref, wp_ref,
               y_ref, psum_ref, psumsq_ref):
        # d_ref: (1,H,W,C_exp) f32 ; SE weights padded to lane-dense width.
        C = d_ref.shape[-1]
        s = _swish_k(d_ref[...] * s1_ref[...] + b1_ref[...])          # BN1 + swish
        # Squeeze-and-Excitation: global pool is complete within this batch block.
        pooled = jnp.mean(s, axis=(1, 2))                             # (1, C)
        r = jnp.maximum(
            jnp.dot(pooled, w1_ref[...], preferred_element_type=jnp.float32)
            + sb1_ref[...], 0.0)
        sc = _sigmoid_k(
            jnp.dot(r, w2_ref[...], preferred_element_type=jnp.float32)
            + sb2_ref[...])
        sse = s * sc.reshape(1, 1, 1, C)
        # 1x1 project conv on the MXU (bf16 operands, f32 accumulation).
        y = jnp.dot(sse.reshape(H * W, C).astype(jnp.bfloat16), wp_ref[...],
                    preferred_element_type=jnp.float32)               # (H*W, C_out)
        C_out = y_ref.shape[-1]
        y_ref[...] = y.reshape(1, H, W, C_out)
        # Per-batch partial BN2 statistics.
        psum_ref[...] = jnp.sum(y, axis=0).reshape(1, 1, C_out)
        psumsq_ref[...] = jnp.sum(y * y, axis=0).reshape(1, 1, C_out)
    return kernel


def bn2_residual_kernel(y_ref, s_ref, b_ref, idn_ref, o_ref):
    # Lane-dense (rows, W*C_out) slab: BN2 apply + residual add.
    o_ref[...] = y_ref[...] * s_ref[...] + b_ref[...] + idn_ref[...]


def bn2_kernel(y_ref, s_ref, b_ref, o_ref):
    o_ref[...] = y_ref[...] * s_ref[...] + b_ref[...]


# ------------------------- wrapper -------------------------

def mbconv_forward(x_nchw, p, *, kernel_size, stride, in_channels, out_channels, expand_ratio):
    # TODO(synk): stride > 1 depthwise downsampling not implemented in the Pallas path.
    assert stride == 1, "only stride==1 implemented"
    B, C_in, H, W = x_nchw.shape
    C_exp = C_in * expand_ratio
    C_out = out_channels
    k = kernel_size
    pad = k // 2
    use_residual = (stride == 1 and in_channels == out_channels)
    f32, bf16 = jnp.float32, jnp.bfloat16

    x_nhwc = jnp.transpose(x_nchw, (0, 2, 3, 1)).astype(f32)   # NCHW -> NHWC
    x_bf = x_nhwc.astype(bf16)                                 # MXU operand copy
    R = B * H * W

    w_e = p['w_expand'].astype(bf16)
    w_p = p['w_proj'].astype(bf16)

    # Pad the SE bottleneck width to a lane-dense multiple of 128 (zero pads are exact).
    C_se = p['se_w1'].shape[1]
    C_se_p = ((C_se + 127) // 128) * 128
    se_w1 = jnp.zeros((C_exp, C_se_p), f32).at[:, :C_se].set(p['se_w1'])
    se_b1 = jnp.zeros((1, C_se_p), f32).at[:, :C_se].set(p['se_b1'])
    se_w2 = jnp.zeros((C_se_p, C_exp), f32).at[:C_se, :].set(p['se_w2'])
    se_b2 = p['se_b2']

    # --- stage 1: expand-conv batch statistics (row-tiled cross-tile reduction) ---
    TR = _pick_row_tile(R, 256, 16)
    nt = R // TR
    x_rows = x_bf.reshape(R, C_in)
    psum0, psumsq0 = pl.pallas_call(
        expand_stats_kernel,
        grid=(nt,),
        in_specs=[pl.BlockSpec((TR, C_in), lambda i: (i, 0)),
                  pl.BlockSpec((C_in, C_exp), lambda i: (0, 0))],
        out_specs=(pl.BlockSpec((1, 1, C_exp), lambda i: (i, 0, 0)),
                   pl.BlockSpec((1, 1, C_exp), lambda i: (i, 0, 0))),
        out_shape=(jax.ShapeDtypeStruct((nt, 1, C_exp), f32),
                   jax.ShapeDtypeStruct((nt, 1, C_exp), f32)),
        compiler_params=_cparams(),
    )(x_rows, w_e)
    scale0, bias0 = _bn_scale_bias(psum0, psumsq0, R, p['bn0_gamma'], p['bn0_beta'])

    # --- stage 2: expand + BN0 + swish + depthwise conv + BN1 partial stats ---
    Hp, Wp = H + 2 * pad, W + 2 * pad
    d, psum1, psumsq1 = pl.pallas_call(
        make_expand_dw_kernel(k, pad, H, W),
        grid=(B,),
        in_specs=[pl.BlockSpec((1, H, W, C_in), lambda b: (b, 0, 0, 0)),
                  pl.BlockSpec((C_in, C_exp), lambda b: (0, 0)),
                  pl.BlockSpec((1, C_exp), lambda b: (0, 0)),
                  pl.BlockSpec((1, C_exp), lambda b: (0, 0)),
                  pl.BlockSpec((k * k, C_exp), lambda b: (0, 0))],
        out_specs=(pl.BlockSpec((1, H, W, C_exp), lambda b: (b, 0, 0, 0)),
                   pl.BlockSpec((1, 1, C_exp), lambda b: (b, 0, 0)),
                   pl.BlockSpec((1, 1, C_exp), lambda b: (b, 0, 0))),
        out_shape=(jax.ShapeDtypeStruct((B, H, W, C_exp), f32),
                   jax.ShapeDtypeStruct((B, 1, C_exp), f32),
                   jax.ShapeDtypeStruct((B, 1, C_exp), f32)),
        scratch_shapes=[pltpu.VMEM((1, Hp, Wp, C_exp), f32),
                        pltpu.VMEM((1, H, W, C_exp), f32)],
        compiler_params=_cparams(),
    )(x_bf, w_e, scale0, bias0, p['w_dw'])
    scale1, bias1 = _bn_scale_bias(psum1, psumsq1, R, p['bn1_gamma'], p['bn1_beta'])

    # --- stage 3: BN1 + swish + SE + 1x1 project + BN2 partial stats ---
    y, psum2, psumsq2 = pl.pallas_call(
        make_se_project_kernel(H, W),
        grid=(B,),
        in_specs=[pl.BlockSpec((1, H, W, C_exp), lambda b: (b, 0, 0, 0)),
                  pl.BlockSpec((1, C_exp), lambda b: (0, 0)),
                  pl.BlockSpec((1, C_exp), lambda b: (0, 0)),
                  pl.BlockSpec((C_exp, C_se_p), lambda b: (0, 0)),
                  pl.BlockSpec((1, C_se_p), lambda b: (0, 0)),
                  pl.BlockSpec((C_se_p, C_exp), lambda b: (0, 0)),
                  pl.BlockSpec((1, C_exp), lambda b: (0, 0)),
                  pl.BlockSpec((C_exp, C_out), lambda b: (0, 0))],
        out_specs=(pl.BlockSpec((1, H, W, C_out), lambda b: (b, 0, 0, 0)),
                   pl.BlockSpec((1, 1, C_out), lambda b: (b, 0, 0)),
                   pl.BlockSpec((1, 1, C_out), lambda b: (b, 0, 0))),
        out_shape=(jax.ShapeDtypeStruct((B, H, W, C_out), f32),
                   jax.ShapeDtypeStruct((B, 1, C_out), f32),
                   jax.ShapeDtypeStruct((B, 1, C_out), f32)),
        compiler_params=_cparams(),
    )(d, scale1, bias1, se_w1, se_b1, se_w2, se_b2, w_p)
    scale2, bias2 = _bn_scale_bias(psum2, psumsq2, R, p['bn2_gamma'], p['bn2_beta'])

    # --- stage 4: BN2 apply (+ residual) on a lane-dense (B*H, W*C_out) slab ---
    WC = W * C_out
    y2 = y.reshape(B * H, WC)
    s2_row = jnp.tile(scale2, (1, W))
    b2_row = jnp.tile(bias2, (1, W))
    TR4 = _pick_row_tile(B * H, 256, 8)
    nt4 = (B * H) // TR4
    in_specs = [pl.BlockSpec((TR4, WC), lambda i: (i, 0)),
                pl.BlockSpec((1, WC), lambda i: (0, 0)),
                pl.BlockSpec((1, WC), lambda i: (0, 0))]
    args = [y2, s2_row, b2_row]
    if use_residual:
        in_specs.append(pl.BlockSpec((TR4, WC), lambda i: (i, 0)))
        args.append(x_nhwc.reshape(B * H, W * C_in))
    out = pl.pallas_call(
        bn2_residual_kernel if use_residual else bn2_kernel,
        grid=(nt4,),
        in_specs=in_specs,
        out_specs=pl.BlockSpec((TR4, WC), lambda i: (i, 0)),
        out_shape=jax.ShapeDtypeStruct((B * H, WC), f32),
        compiler_params=_cparams(),
    )(*args)

    out = out.reshape(B, H, W, C_out)
    return jnp.transpose(out, (0, 3, 1, 2))  # NHWC -> NCHW


# ------------------------- pure-JAX reference -------------------------
# Mirrors the PyTorch module (training-mode BatchNorm) and applies the same
# bf16 MXU-operand casts as the Pallas path so the structural check is tight.

def mbconv_reference(x_nchw, p, *, kernel_size, stride, in_channels, out_channels, expand_ratio):
    k = kernel_size
    pad = k // 2
    B, C_in, H, W = x_nchw.shape
    f32, bf16 = jnp.float32, jnp.bfloat16
    x = jnp.transpose(x_nchw, (0, 2, 3, 1)).astype(f32)

    def bn(t, g, b):
        m = jnp.mean(t, axis=(0, 1, 2), keepdims=True)
        v = jnp.mean((t - m) ** 2, axis=(0, 1, 2), keepdims=True)
        return (t - m) * jax.lax.rsqrt(v + _EPS) * g + b

    h = jnp.einsum('bhwc,ce->bhwe', x.astype(bf16), p['w_expand'].astype(bf16),
                   preferred_element_type=f32)
    a = _swish_ref(bn(h, p['bn0_gamma'], p['bn0_beta']))
    ap = jnp.pad(a, ((0, 0), (pad, pad), (pad, pad), (0, 0)))
    d = jnp.zeros_like(a)
    for dy in range(k):
        for dx in range(k):
            d = d + ap[:, dy:dy + H, dx:dx + W, :] * p['w_dw'][dy * k + dx]
    s = _swish_ref(bn(d, p['bn1_gamma'], p['bn1_beta']))
    pooled = jnp.mean(s, axis=(1, 2))
    r = jnp.maximum(pooled @ p['se_w1'] + p['se_b1'], 0.0)
    sc = _sigmoid_ref(r @ p['se_w2'] + p['se_b2'])
    sse = s * sc[:, None, None, :]
    y = jnp.einsum('bhwc,co->bhwo', sse.astype(bf16), p['w_proj'].astype(bf16),
                   preferred_element_type=f32)
    y = bn(y, p['bn2_gamma'], p['bn2_beta'])
    if stride == 1 and in_channels == out_channels:
        y = y + x
    return jnp.transpose(y, (0, 3, 1, 2))


# ------------------------- deterministic parameters -------------------------

def init_params(key, c_in, c_out, expand_ratio, ksize, se_ratio=0.25):
    c_exp = c_in * expand_ratio
    squeeze_factor = max(1, int(c_in * se_ratio))          # matches the PyTorch module
    c_red = max(1, c_exp // squeeze_factor)
    ks = jax.random.split(key, 14)
    f32 = jnp.float32
    return {
        'w_expand': (0.2 * jax.random.normal(ks[0], (c_in, c_exp))).astype(f32),
        'bn0_gamma': (1.0 + 0.1 * jax.random.normal(ks[1], (1, c_exp))).astype(f32),
        'bn0_beta': (0.1 * jax.random.normal(ks[2], (1, c_exp))).astype(f32),
        'w_dw': (0.2 * jax.random.normal(ks[3], (ksize * ksize, c_exp))).astype(f32),
        'bn1_gamma': (1.0 + 0.1 * jax.random.normal(ks[4], (1, c_exp))).astype(f32),
        'bn1_beta': (0.1 * jax.random.normal(ks[5], (1, c_exp))).astype(f32),
        'se_w1': (0.3 * jax.random.normal(ks[6], (c_exp, c_red))).astype(f32),
        'se_b1': (0.1 * jax.random.normal(ks[7], (1, c_red))).astype(f32),
        'se_w2': (0.3 * jax.random.normal(ks[8], (c_red, c_exp))).astype(f32),
        'se_b2': (0.1 * jax.random.normal(ks[9], (1, c_exp))).astype(f32),
        'w_proj': (0.2 * jax.random.normal(ks[10], (c_exp, c_out))).astype(f32),
        'bn2_gamma': (1.0 + 0.1 * jax.random.normal(ks[11], (1, c_out))).astype(f32),
        'bn2_beta': (0.1 * jax.random.normal(ks[12], (1, c_out))).astype(f32),
    }


if __name__ == "__main__":
    key = jax.random.PRNGKey(0)
    B, C_in, H, W = 2, 8, 16, 16
    C_out, expand_ratio, ksize, stride = 8, 4, 3, 1

    pkey, xkey = jax.random.split(key)
    params = init_params(pkey, C_in, C_out, expand_ratio, ksize, se_ratio=0.25)
    x = jax.random.normal(xkey, (B, C_in, H, W), jnp.float32)

    y = mbconv_forward(x, params, kernel_size=ksize, stride=stride,
                       in_channels=C_in, out_channels=C_out, expand_ratio=expand_ratio)
    y = jax.block_until_ready(y)

    y_ref = mbconv_reference(x, params, kernel_size=ksize, stride=stride,
                             in_channels=C_in, out_channels=C_out, expand_ratio=expand_ratio)
    np.testing.assert_allclose(np.asarray(y), np.asarray(y_ref), rtol=2e-3, atol=2e-3)
    print("KERNEL_OK")
</pallas_src>

<mosaic_0001>
module attributes {stable_mosaic.version = 11 : i64} {
  func.func @expand_stats_kernel(%arg0: i32, %arg1: memref<256x8xbf16, #tpu.memory_space<vmem>>, %arg2: memref<8x32xbf16, #tpu.memory_space<vmem>>, %arg3: memref<1x1x32xf32, #tpu.memory_space<vmem>>, %arg4: memref<1x1x32xf32, #tpu.memory_space<vmem>>) attributes {dimension_semantics = [#tpu.dimension_semantics<parallel>], iteration_bounds = array<i64: 2>, scalar_prefetch = 0 : i64, scratch_operands = 0 : i64, tpu.core_type = #tpu.core_type<tc>, window_params = [{transform_indices = @transform_0, window_bounds = array<i64: 256, 8>}, {pipeline_mode = #tpu.pipeline_mode<synchronous>, transform_indices = @transform_1, window_bounds = array<i64: 8, 32>}, {transform_indices = @transform_2, window_bounds = array<i64: 1, 1, 32>}, {transform_indices = @transform_3, window_bounds = array<i64: 1, 1, 32>}]} {
    %c0 = arith.constant 0 : index
    %c0_0 = arith.constant 0 : index
    %0 = vector.load %arg1[%c0, %c0_0] : memref<256x8xbf16, #tpu.memory_space<vmem>>, vector<256x8xbf16>
    %c0_1 = arith.constant 0 : index
    %c0_2 = arith.constant 0 : index
    %1 = vector.load %arg2[%c0_1, %c0_2] : memref<8x32xbf16, #tpu.memory_space<vmem>>, vector<8x32xbf16>
    %cst = arith.constant dense<0.000000e+00> : vector<256x32xf32>
    %2 = tpu.matmul %0, %1, %cst {dimension_numbers = #tpu.dot_dimension_numbers<[1], [0], [0], [1], [0, 0, 1, 1], [], []>} : vector<256x8xbf16>, vector<8x32xbf16>, vector<256x32xf32> -> vector<256x32xf32>
    %cst_3 = arith.constant dense<0.000000e+00> : vector<32xf32>
    %3 = vector.multi_reduction <add>, %2, %cst_3 [0] : vector<256x32xf32> to vector<32xf32>
    %4 = vector.shape_cast %3 : vector<32xf32> to vector<1x1x32xf32>
    %c0_4 = arith.constant 0 : index
    %c0_5 = arith.constant 0 : index
    %c0_6 = arith.constant 0 : index
    %5 = vector.load %arg3[%c0_4, %c0_5, %c0_6] : memref<1x1x32xf32, #tpu.memory_space<vmem>>, vector<1x1x32xf32>
    tpu.vector_store %arg3[%c0_4, %c0_5, %c0_6], %4 {strides = array<i32>} : memref<1x1x32xf32, #tpu.memory_space<vmem>>, vector<1x1x32xf32>,
    %6 = arith.mulf %2, %2 : vector<256x32xf32>
    %cst_7 = arith.constant dense<0.000000e+00> : vector<32xf32>
    %7 = vector.multi_reduction <add>, %6, %cst_7 [0] : vector<256x32xf32> to vector<32xf32>
    %8 = vector.shape_cast %7 : vector<32xf32> to vector<1x1x32xf32>
    %c0_8 = arith.constant 0 : index
    %c0_9 = arith.constant 0 : index
    %c0_10 = arith.constant 0 : index
    %9 = vector.load %arg4[%c0_8, %c0_9, %c0_10] : memref<1x1x32xf32, #tpu.memory_space<vmem>>, vector<1x1x32xf32>
    tpu.vector_store %arg4[%c0_8, %c0_9, %c0_10], %8 {strides = array<i32>} : memref<1x1x32xf32, #tpu.memory_space<vmem>>, vector<1x1x32xf32>,
    return
  }
  func.func @transform_0(%arg0: i32) -> (i32, i32) {
    %c0_i32 = arith.constant 0 : i32
    %c0_i32_0 = arith.constant 0 : i32
    return %arg0, %c0_i32 : i32, i32
  }
  func.func @transform_1(%arg0: i32) -> (i32, i32) {
    %c0_i32 = arith.constant 0 : i32
    %c0_i32_0 = arith.constant 0 : i32
    %c0_i32_1 = arith.constant 0 : i32
    return %c0_i32, %c0_i32_0 : i32, i32
  }
  func.func @transform_2(%arg0: i32) -> (i32, i32, i32) {
    %c0_i32 = arith.constant 0 : i32
    %c0_i32_0 = arith.constant 0 : i32
    %c0_i32_1 = arith.constant 0 : i32
    return %arg0, %c0_i32, %c0_i32_0 : i32, i32, i32
  }
  func.func @transform_3(%arg0: i32) -> (i32, i32, i32) {
    %c0_i32 = arith.constant 0 : i32
    %c0_i32_0 = arith.constant 0 : i32
    %c0_i32_1 = arith.constant 0 : i32
    return %arg0, %c0_i32, %c0_i32_0 : i32, i32, i32
  }
}

</mosaic_0001>

<llo_original>
// kernel: tpu_custom_call.1
$region0: #{tpu_custom_call.1}
  #allocation0 [shape = 'u32[]', space=smem, size = 0x4, offset = 0x4, fixed_abs, tag = 'smem constant byte address 0x4 - core index']
  #allocation1 [shape = 'u32[144,128]{1,0:T(1,128)}', space=vmem, size = 0x12000, scoped, tag = 'internal scratch']
  %s0 = inlined_call_operand.vmem [shape: bf16[512,8], index: 0, kind: input, shape index: {}]
  %s1 = inlined_call_operand.vmem [shape: bf16[8,32], index: 1, kind: input, shape index: {}]
  %s2 = inlined_call_operand.hbm [shape: f32[2,1,32], index: 2, kind: output, shape index: {0}]
  %s3 = inlined_call_operand.hbm [shape: f32[2,1,32], index: 3, kind: output, shape index: {1}]
  %4 = xla_tuple %s2, %s3
  %s5 = sld [smem:[#allocation0]]
  $region49: #{tpu_custom_call.1} parent=0
    _
  %s7 = ssub.s32 1, %s5
  %s8 = scalar_select 0, %s7, %s5
  $region1: #{tpu_custom_call.1} parent=0
    #allocation2 [shape = 'u8[1024]{0}', space=vmem, size = 0x400, scoped, tag = 'output window, operand 0']
    #allocation3 [shape = 's32[2]{0}', space=sflag, size = 0x8, scoped, tag = 'scoped memory for tpu_custom_call.1']
    #allocation4 [shape = 'u8[1024]{0}', space=vmem, size = 0x400, scoped, tag = 'output window, operand 1']
    #allocation5 [shape = 's32[2]{0}', space=sflag, size = 0x8, scoped, tag = 'scoped memory for tpu_custom_call.1']
    %9 = vsyncpa [#allocation3], 0
    %s10 = scalar_lea.sflag [#allocation3], 1
    %11 = vsyncpa %s10, 0
    %12 = vsyncpa [#allocation5], 0
    %s13 = scalar_lea.sflag [#allocation5], 1
    %14 = vsyncpa %s13, 0
    loop: start=0, step=1, limit=4
    $region2: #{tpu_custom_call.1} parent=1 // loop_pre_header
      _
    $region3: #{tpu_custom_call.1} parent=1 // loop_header
      %s16 = sphi 0, %s20
      %p17 = scmp.ge.s32.totalorder %s16, 4
      %s26 = sphi 0, %s28
      %s29 = sphi 0, %s26
      %s30 = sphi 0, %s29
      %s46 = sphi 0, %s30
      %s50 = sphi 0, %s50
      %s52 = sphi 0, %s50
      %s53 = sphi 0, %s52
      %s67 = sphi 0, %s53
      %s73 = sphi 0, %s75
      %s76 = sphi 0, %s73
      %s77 = sphi 0, %s76
      %s93 = sphi 0, %s77
      %s99 = sphi 0, %s101
      %s102 = sphi 0, %s99
      %s103 = sphi 0, %s102
      %s119 = sphi 0, %s103
    $region4: #{tpu_custom_call.1} parent=1 // loop_header_branch
      %19 = sbr.rel (%p17) target = $region8
    $region5: #{tpu_custom_call.1} parent=1 // loop_body
      %s21 = ssub.s32 %s16, 1
      %s22 = ssub.s32 %s16, 2
      %s23 = sadd.s32 %s16, 1
      %s24 = ssub.s32 %s16, %s23
      %p25 = scmp.eq.s32.totalorder %s24, 0
      %s27 = sadd.s32 %s26, 1
      %s28 = scalar_select %p25, %s26, %s27
      %p31 = pneg %p25
      %p32 = scmp.eq.s32.totalorder %s16, 1
      %p33 = por %p31, %p32
      %p34 = scmp.ne.s32.totalorder %s26, %s29
      %p35 = scmp.eq.s32.totalorder %s16, 0
      %p36 = por %p34, %p35
      %p37 = scmp.ne.s32.totalorder %s26, %s29
      %p38 = scmp.eq.s32.totalorder %s21, 1
      %p39 = por %p37, %p38
      %p40 = scmp.ne.s32.totalorder %s29, %s30
      %p41 = scmp.eq.s32.totalorder %s21, 0
      %p42 = por %p40, %p41
      %p43 = scmp.ne.s32.totalorder %s29, %s30
      %p44 = scmp.eq.s32.totalorder %s22, 1
      %p45 = por %p43, %p44
      %p47 = scmp.ne.s32.totalorder %s30, %s46
      %p48 = scmp.eq.s32.totalorder %s22, 0
      %p49 = por %p47, %p48
      %s51 = sadd.s32 %s50, 1
      %p54 = scmp.eq.s32.totalorder %s16, 1
      %p55 = scmp.ne.s32.totalorder %s50, %s52
      %p56 = scmp.eq.s32.totalorder %s16, 0
      %p57 = por %p55, %p56
      %p58 = scmp.ne.s32.totalorder %s50, %s52
      %p59 = scmp.eq.s32.totalorder %s21, 1
      %p60 = por %p58, %p59
      %p61 = scmp.ne.s32.totalorder %s52, %s53
      %p62 = scmp.eq.s32.totalorder %s21, 0
      %p63 = por %p61, %p62
      %p64 = scmp.ne.s32.totalorder %s52, %s53
      %p65 = scmp.eq.s32.totalorder %s22, 1
      %p66 = por %p64, %p65
      %p68 = scmp.ne.s32.totalorder %s53, %s67
      %p69 = scmp.eq.s32.totalorder %s22, 0
      %p70 = por %p68, %p69
      %s71 = ssub.s32 %s16, %s23
      %p72 = scmp.eq.s32.totalorder %s71, 0
      %s74 = sadd.s32 %s73, 1
      %s75 = scalar_select %p72, %s73, %s74
      %p78 = pneg %p72
      %p79 = scmp.eq.s32.totalorder %s16, 1
      %p80 = por %p78, %p79
      %p81 = scmp.ne.s32.totalorder %s73, %s76
      %p82 = scmp.eq.s32.totalorder %s16, 0
      %p83 = por %p81, %p82
      %p84 = scmp.ne.s32.totalorder %s73, %s76
      %p85 = scmp.eq.s32.totalorder %s21, 1
      %p86 = por %p84, %p85
      %p87 = scmp.ne.s32.totalorder %s76, %s77
      %p88 = scmp.eq.s32.totalorder %s21, 0
      %p89 = por %p87, %p88
      %p90 = scmp.ne.s32.totalorder %s76, %s77
      %p91 = scmp.eq.s32.totalorder %s22, 1
      %p92 = por %p90, %p91
      %p94 = scmp.ne.s32.totalorder %s77, %s93
      %p95 = scmp.eq.s32.totalorder %s22, 0
      %p96 = por %p94, %p95
      %s97 = ssub.s32 %s16, %s23
      %p98 = scmp.eq.s32.totalorder %s97, 0
      %s100 = sadd.s32 %s99, 1
      %s101 = scalar_select %p98, %s99, %s100
      %p104 = pneg %p98
      %p105 = scmp.eq.s32.totalorder %s16, 1
      %p106 = por %p104, %p105
      %p107 = scmp.ne.s32.totalorder %s99, %s102
      %p108 = scmp.eq.s32.totalorder %s16, 0
      %p109 = por %p107, %p108
      %p110 = scmp.ne.s32.totalorder %s99, %s102
      %p111 = scmp.eq.s32.totalorder %s21, 1
      %p112 = por %p110, %p111
      %p113 = scmp.ne.s32.totalorder %s102, %s103
      %p114 = scmp.eq.s32.totalorder %s21, 0
      %p115 = por %p113, %p114
      %p116 = scmp.ne.s32.totalorder %s102, %s103
      %p117 = scmp.eq.s32.totalorder %s22, 1
      %p118 = por %p116, %p117
      %p120 = scmp.ne.s32.totalorder %s103, %s119
      %p121 = scmp.eq.s32.totalorder %s22, 0
      %p122 = por %p120, %p121
      %p123 = scmp.le.s32.totalorder 1, %s16
      %p124 = scmp.lt.s32.totalorder %s16, 3
      %p125 = pnand %p123, %p124
      %p126 = pneg %p125
      // Predicated region
      $region9: #{tpu_custom_call.1} parent=5 // pred_check
        _
      $region10: #{tpu_custom_call.1} parent=5 // pred_check_branch
        %128 = sbr.rel (%p125) target = $region12
      $region11: #{tpu_custom_call.1} parent=5 // pred_region
        %s129 = ssub.s32 %s16, 1
        // Predicated region
        $region13: #{tpu_custom_call.1} parent=11 // pred_check
          %p130 = pneg %p63
        $region14: #{tpu_custom_call.1} parent=11 // pred_check_branch
          %132 = sbr.rel (%p130) target = $region16
        $region15: #{tpu_custom_call.1} parent=11 // pred_region
          _
        $region16: #{tpu_custom_call.1} parent=11 // pred_fallthru
          _
      $region12: #{tpu_custom_call.1} parent=5 // pred_fallthru
        _
      %p133 = scmp.lt.s32.totalorder %s16, 2
      // Predicated region
      $region17: #{tpu_custom_call.1} parent=5 // pred_check
        %p134 = pneg %p133
      $region18: #{tpu_custom_call.1} parent=5 // pred_check_branch
        %136 = sbr.rel (%p134) target = $region20
      $region19: #{tpu_custom_call.1} parent=5 // pred_region
        // Predicated region
        $region21: #{tpu_custom_call.1} parent=19 // pred_check
          %p137 = pneg %p36
        $region22: #{tpu_custom_call.1} parent=19 // pred_check_branch
          %139 = sbr.rel (%p137) target = $region24
        $region23: #{tpu_custom_call.1} parent=19 // pred_region
          %s140 = smul.u32 32, %s16
          %p141 = scmp.lt.s32.totalorder %s140, 63
          %s142 = scalar_select %p141, %s140, 63
          %s143 = smul.addr %s142, 4
          %s144 = scalar_lea.vmem %s0, %s143
          %s145 = smul.u32 32, %s16
        $region24: #{tpu_custom_call.1} parent=19 // pred_fallthru
          _
      $region20: #{tpu_custom_call.1} parent=5 // pred_fallthru
        _
      %p146 = scmp.le.s32.totalorder 1, %s16
      %p147 = scmp.lt.s32.totalorder %s16, 3
      %p148 = pnand %p146, %p147
      %p149 = pneg %p148
      // Predicated region
      $region25: #{tpu_custom_call.1} parent=5 // pred_check
        _
      $region26: #{tpu_custom_call.1} parent=5 // pred_check_branch
        %151 = sbr.rel (%p148) target = $region28
      $region27: #{tpu_custom_call.1} parent=5 // pred_region
        %s152 = ssub.s32 %s16, 1
        %s153 = smul.u32 32, %s21
        %p154 = scmp.lt.s32.totalorder %s153, 63
        %s155 = scalar_select %p154, %s153, 63
        %s156 = smul.addr %s155, 4
        %s157 = scalar_lea.vmem %s0, %s156
        %p158 = pneg %p42
        %p159 = pneg %p39
        %p160 = pneg %p63
        %p161 = pneg %p60
        %p162 = pneg %p89
        %p163 = pneg %p86
        %s164 = sand.u32 %s76, 1
        %s165 = scalar_lea.sflag [#allocation3], %s164
        %s166 = sand.u32 %s76, 1
        %s167 = scalar_lea.vmem [#allocation2], %s166
        %p168 = pneg %p115
        %p169 = pneg %p112
        %s170 = sand.u32 %s102, 1
        %s171 = scalar_lea.sflag [#allocation5], %s170
        %s172 = sand.u32 %s102, 1
        %s173 = scalar_lea.vmem [#allocation4], %s172
        %s174 = smul.u32 32, %s21
        %p175 = scmp.lt.s32.totalorder %s174, 63
        %s176 = scalar_select %p175, %s174, 63
        %s177 = smul.addr %s176, 4
        %s178 = scalar_lea.vmem %s0, %s177
        %s179 = smul.u32 32, %s21
        %v181 = vld [vmem:[%s178] sm:$0xf]
        %v182 = vld [vmem:[%s178 + $0x4] sm:$0xf]
        %v183 = vld [vmem:[%s178 + $0x8] sm:$0xf]
        %v184 = vld [vmem:[%s178 + $0xc] sm:$0xf]
        %v185 = vld [vmem:[%s178 + $0x10] sm:$0xf]
        %v186 = vld [vmem:[%s178 + $0x14] sm:$0xf]
        %v187 = vld [vmem:[%s178 + $0x18] sm:$0xf]
        %v188 = vld [vmem:[%s178 + $0x1c] sm:$0xf]
        %v189 = vld [vmem:[%s178 + $0x20] sm:$0xf]
        %v190 = vld [vmem:[%s178 + $0x24] sm:$0xf]
        %v191 = vld [vmem:[%s178 + $0x28] sm:$0xf]
        %v192 = vld [vmem:[%s178 + $0x2c] sm:$0xf]
        %v193 = vld [vmem:[%s178 + $0x30] sm:$0xf]
        %v194 = vld [vmem:[%s178 + $0x34] sm:$0xf]
        %v195 = vld [vmem:[%s178 + $0x38] sm:$0xf]
        %v196 = vld [vmem:[%s178 + $0x3c] sm:$0xf]
        %v197 = vld [vmem:[%s178 + $0x40] sm:$0xf]
        %v198 = vld [vmem:[%s178 + $0x44] sm:$0xf]
        %v199 = vld [vmem:[%s178 + $0x48] sm:$0xf]
        %v200 = vld [vmem:[%s178 + $0x4c] sm:$0xf]
        %v201 = vld [vmem:[%s178 + $0x50] sm:$0xf]
        %v202 = vld [vmem:[%s178 + $0x54] sm:$0xf]
        %v203 = vld [vmem:[%s178 + $0x58] sm:$0xf]
        %v204 = vld [vmem:[%s178 + $0x5c] sm:$0xf]
        %v205 = vld [vmem:[%s178 + $0x60] sm:$0xf]
        %v206 = vld [vmem:[%s178 + $0x64] sm:$0xf]
        %v207 = vld [vmem:[%s178 + $0x68] sm:$0xf]
        %v208 = vld [vmem:[%s178 + $0x6c] sm:$0xf]
        %v209 = vld [vmem:[%s178 + $0x70] sm:$0xf]
        %v210 = vld [vmem:[%s178 + $0x74] sm:$0xf]
        %v211 = vld [vmem:[%s178 + $0x78] sm:$0xf]
        %v212 = vld [vmem:[%s178 + $0x7c] sm:$0xf]
        %v213 = vld [vmem:[%s1] sm:$0xf]
        %v246 = vunpack.c.l.b16 %v181
        %v247 = vunpack.c.l.b16 %v182
        %v248 = vunpack.c.l.b16 %v183
        %v249 = vunpack.c.l.b16 %v184
        %v250 = vunpack.c.l.b16 %v185
        %v251 = vunpack.c.l.b16 %v186
        %v252 = vunpack.c.l.b16 %v187
        %v253 = vunpack.c.l.b16 %v188
        %v254 = vunpack.c.l.b16 %v189
        %v255 = vunpack.c.l.b16 %v190
        %v256 = vunpack.c.l.b16 %v191
        %v257 = vunpack.c.l.b16 %v192
        %v258 = vunpack.c.l.b16 %v193
        %v259 = vunpack.c.l.b16 %v194
        %v260 = vunpack.c.l.b16 %v195
        %v261 = vunpack.c.l.b16 %v196
        %v262 = vunpack.c.l.b16 %v197
        %v263 = vunpack.c.l.b16 %v198
        %v264 = vunpack.c.l.b16 %v199
        %v265 = vunpack.c.l.b16 %v200
        %v266 = vunpack.c.l.b16 %v201
        %v267 = vunpack.c.l.b16 %v202
        %v268 = vunpack.c.l.b16 %v203
        %v269 = vunpack.c.l.b16 %v204
        %v270 = vunpack.c.l.b16 %v205
        %v271 = vunpack.c.l.b16 %v206
        %v272 = vunpack.c.l.b16 %v207
        %v273 = vunpack.c.l.b16 %v208
        %v274 = vunpack.c.l.b16 %v209
        %v275 = vunpack.c.l.b16 %v210
        %v276 = vunpack.c.l.b16 %v211
        %v277 = vunpack.c.l.b16 %v212
        %v278 = vpack.c.b16 %v247, %v246
        %v279 = vpack.c.b16 %v249, %v248
        %v280 = vpack.c.b16 %v251, %v250
        %v281 = vpack.c.b16 %v253, %v252
        %v282 = vpack.c.b16 %v255, %v254
        %v283 = vpack.c.b16 %v257, %v256
        %v284 = vpack.c.b16 %v259, %v258
        %v285 = vpack.c.b16 %v261, %v260
        %v286 = vpack.c.b16 %v263, %v262
        %v287 = vpack.c.b16 %v265, %v264
        %v288 = vpack.c.b16 %v267, %v266
        %v289 = vpack.c.b16 %v269, %v268
        %v290 = vpack.c.b16 %v271, %v270
        %v291 = vpack.c.b16 %v273, %v272
        %v292 = vpack.c.b16 %v275, %v274
        %v293 = vpack.c.b16 %v277, %v276
        %vm294 = vcmask 64512
        %v296 = vsel %vm294, %v278, 0
        %v299 = vsel %vm294, %v279, 0
        %v302 = vsel %vm294, %v280, 0
        %v305 = vsel %vm294, %v281, 0
        %v308 = vsel %vm294, %v282, 0
        %v311 = vsel %vm294, %v283, 0
        %v314 = vsel %vm294, %v284, 0
        %v317 = vsel %vm294, %v285, 0
        %v320 = vsel %vm294, %v286, 0
        %v323 = vsel %vm294, %v287, 0
        %v326 = vsel %vm294, %v288, 0
        %v329 = vsel %vm294, %v289, 0
        %v332 = vsel %vm294, %v290, 0
        %v335 = vsel %vm294, %v291, 0
        %v338 = vsel %vm294, %v292, 0
        %v341 = vsel %vm294, %v293, 0
        %vm343 = vcmask 1043456
        %v345 = vsel %vm343, %v213, 0
        %347 = vmatprep.subr.bf16.mxu0 0
        %348 = vmatpush1.bf16.msra.mxu0 %v345
        %349 = vmatprep.subr.bf16.mxu0 0
        %350 = vmatpush1.bf16.msra.mxu0 0
        %351 = vmatprep.subr.bf16.mxu0 0
        %352 = vmatpush1.bf16.msra.mxu0 0
        %353 = vmatprep.subr.bf16.mxu0 0
        %354 = vmatpush1.bf16.msra.mxu0 0
        %355 = vmatprep.subr.bf16.mxu0 0
        %356 = vmatpush1.bf16.msra.mxu0 0
        %357 = vmatprep.subr.bf16.mxu0 0
        %358 = vmatpush1.bf16.msra.mxu0 0
        %359 = vmatprep.subr.bf16.mxu0 0
        %360 = vmatpush1.bf16.msra.mxu0 0
        %361 = vmatprep.subr.bf16.mxu0 0
        %362 = vmatpush1.bf16.msra.mxu0 0
        %363 = vmatprep.subr.bf16.mxu0 0
        %364 = vmatpush1.bf16.msra.mxu0 0
        %365 = vmatprep.subr.bf16.mxu0 0
        %366 = vmatpush1.bf16.msra.mxu0 0
        %367 = vmatprep.subr.bf16.mxu0 0
        %368 = vmatpush1.bf16.msra.mxu0 0
        %369 = vmatprep.subr.bf16.mxu0 0
        %370 = vmatpush1.bf16.msra.mxu0 0
        %371 = vmatprep.subr.bf16.mxu0 0
        %372 = vmatpush1.bf16.msra.mxu0 0
        %373 = vmatprep.subr.bf16.mxu0 0
        %374 = vmatpush1.bf16.msra.mxu0 0
        %375 = vmatprep.subr.bf16.mxu0 0
        %376 = vmatpush1.bf16.msra.mxu0 0
        %377 = vmatprep.subr.bf16.mxu0 0
        %378 = vmatpush1.bf16.msra.mxu0 0
        %379 = vmatprep.mubr.bf16.mxu0 0
        %380 = vmatmul.mubr.bf16.gmra.mrb[0].mxu0 %v296
        %v381 = vpop.f32.mrb[0].mxu0
        %v382 = vadd.f32 0.0, %v381
        %v383 = vpop.f32.mrb[0].mxu0
        %v384 = vpop.f32.mrb[0].mxu0
        %v385 = vadd.f32 0.0, %v384
        %v386 = vpop.f32.mrb[0].mxu0
        %387 = vmatprep.mubr.bf16.mxu0 0
        %388 = vmatmul.mubr.bf16.gmra.mrb[0].mxu0 %v299
        %v389 = vpop.f32.mrb[0].mxu0
        %v390 = vadd.f32 0.0, %v389
        %v391 = vpop.f32.mrb[0].mxu0
        %v392 = vpop.f32.mrb[0].mxu0
        %v393 = vadd.f32 0.0, %v392
        %v394 = vpop.f32.mrb[0].mxu0
        %395 = vmatprep.mubr.bf16.mxu0 0
        %396 = vmatmul.mubr.bf16.gmra.mrb[0].mxu0 %v302
        %v397 = vpop.f32.mrb[0].mxu0
        %v398 = vadd.f32 0.0, %v397
        %v399 = vpop.f32.mrb[0].mxu0
        %v400 = vpop.f32.mrb[0].mxu0
        %v401 = vadd.f32 0.0, %v400
        %v402 = vpop.f32.mrb[0].mxu0
        %403 = vmatprep.mubr.bf16.mxu0 0
        %404 = vmatmul.mubr.bf16.gmra.mrb[0].mxu0 %v305
        %v405 = vpop.f32.mrb[0].mxu0
        %v406 = vadd.f32 0.0, %v405
        %v407 = vpop.f32.mrb[0].mxu0
        %v408 = vpop.f32.mrb[0].mxu0
        %v409 = vadd.f32 0.0, %v408
        %v410 = vpop.f32.mrb[0].mxu0
        %411 = vmatprep.mubr.bf16.mxu0 0
        %412 = vmatmul.mubr.bf16.gmra.mrb[0].mxu0 %v308
        %v413 = vpop.f32.mrb[0].mxu0
        %v414 = vadd.f32 0.0, %v413
        %v415 = vpop.f32.mrb[0].mxu0
        %v416 = vpop.f32.mrb[0].mxu0
        %v417 = vadd.f32 0.0, %v416
        %v418 = vpop.f32.mrb[0].mxu0
        %419 = vmatprep.mubr.bf16.mxu0 0
        %420 = vmatmul.mubr.bf16.gmra.mrb[0].mxu0 %v311
        %v421 = vpop.f32.mrb[0].mxu0
        %v422 = vadd.f32 0.0, %v421
        %v423 = vpop.f32.mrb[0].mxu0
        %v424 = vpop.f32.mrb[0].mxu0
        %v425 = vadd.f32 0.0, %v424
        %v426 = vpop.f32.mrb[0].mxu0
        %427 = vmatprep.mubr.bf16.mxu0 0
        %428 = vmatmul.mubr.bf16.gmra.mrb[0].mxu0 %v314
        %v429 = vpop.f32.mrb[0].mxu0
        %v430 = vadd.f32 0.0, %v429
        %v431 = vpop.f32.mrb[0].mxu0
        %v432 = vpop.f32.mrb[0].mxu0
        %v433 = vadd.f32 0.0, %v432
        %v434 = vpop.f32.mrb[0].mxu0
        %435 = vmatprep.mubr.bf16.mxu0 0
        %436 = vmatmul.mubr.bf16.gmra.mrb[0].mxu0 %v317
        %v437 = vpop.f32.mrb[0].mxu0
        %v438 = vadd.f32 0.0, %v437
        %v439 = vpop.f32.mrb[0].mxu0
        %v440 = vpop.f32.mrb[0].mxu0
        %v441 = vadd.f32 0.0, %v440
        %v442 = vpop.f32.mrb[0].mxu0
        %443 = vmatprep.mubr.bf16.mxu0 0
        %444 = vmatmul.mubr.bf16.gmra.mrb[0].mxu0 %v320
        %v445 = vpop.f32.mrb[0].mxu0
        %v446 = vadd.f32 0.0, %v445
        %v447 = vpop.f32.mrb[0].mxu0
        %v448 = vpop.f32.mrb[0].mxu0
        %v449 = vadd.f32 0.0, %v448
        %v450 = vpop.f32.mrb[0].mxu0
        %451 = vmatprep.mubr.bf16.mxu0 0
        %452 = vmatmul.mubr.bf16.gmra.mrb[0].mxu0 %v323
        %v453 = vpop.f32.mrb[0].mxu0
        %v454 = vadd.f32 0.0, %v453
        %v455 = vpop.f32.mrb[0].mxu0
        %v456 = vpop.f32.mrb[0].mxu0
        %v457 = vadd.f32 0.0, %v456
        %v458 = vpop.f32.mrb[0].mxu0
        %459 = vmatprep.mubr.bf16.mxu0 0
        %460 = vmatmul.mubr.bf16.gmra.mrb[0].mxu0 %v326
        %v461 = vpop.f32.mrb[0].mxu0
        %v462 = vadd.f32 0.0, %v461
        %v463 = vpop.f32.mrb[0].mxu0
        %v464 = vpop.f32.mrb[0].mxu0
        %v465 = vadd.f32 0.0, %v464
        %v466 = vpop.f32.mrb[0].mxu0
        %467 = vmatprep.mubr.bf16.mxu0 0
        %468 = vmatmul.mubr.bf16.gmra.mrb[0].mxu0 %v329
        %v469 = vpop.f32.mrb[0].mxu0
        %v470 = vadd.f32 0.0, %v469
        %v471 = vpop.f32.mrb[0].mxu0
        %v472 = vpop.f32.mrb[0].mxu0
        %v473 = vadd.f32 0.0, %v472
        %v474 = vpop.f32.mrb[0].mxu0
        %475 = vmatprep.mubr.bf16.mxu0 0
        %476 = vmatmul.mubr.bf16.gmra.mrb[0].mxu0 %v332
        %v477 = vpop.f32.mrb[0].mxu0
        %v478 = vadd.f32 0.0, %v477
        %v479 = vpop.f32.mrb[0].mxu0
        %v480 = vpop.f32.mrb[0].mxu0
        %v481 = vadd.f32 0.0, %v480
        %v482 = vpop.f32.mrb[0].mxu0
        %483 = vmatprep.mubr.bf16.mxu0 0
        %484 = vmatmul.mubr.bf16.gmra.mrb[0].mxu0 %v335
        %v485 = vpop.f32.mrb[0].mxu0
        %v486 = vadd.f32 0.0, %v485
        %v487 = vpop.f32.mrb[0].mxu0
        %v488 = vpop.f32.mrb[0].mxu0
        %v489 = vadd.f32 0.0, %v488
        %v490 = vpop.f32.mrb[0].mxu0
        %491 = vmatprep.mubr.bf16.mxu0 0
        %492 = vmatmul.mubr.bf16.gmra.mrb[0].mxu0 %v338
        %v493 = vpop.f32.mrb[0].mxu0
        %v494 = vadd.f32 0.0, %v493
        %v495 = vpop.f32.mrb[0].mxu0
        %v496 = vpop.f32.mrb[0].mxu0
        %v497 = vadd.f32 0.0, %v496
        %v498 = vpop.f32.mrb[0].mxu0
        %499 = vmatprep.mubr.bf16.mxu0 0
        %500 = vmatmul.mubr.bf16.gmra.mrb[0].mxu0 %v341
        %v501 = vpop.f32.mrb[0].mxu0
        %v502 = vadd.f32 0.0, %v501
        %v503 = vpop.f32.mrb[0].mxu0
        %v504 = vpop.f32.mrb[0].mxu0
        %v505 = vadd.f32 0.0, %v504
        %v506 = vpop.f32.mrb[0].mxu0
        %507 = vdwg.mxu0
        %vm508 = vcmask 261120
        %v509 = vsel %vm508, %v382, 0.0
        %v510 = vsel %vm508, %v385, 0.0
        %v511 = vadd.f32 %v509, %v510
        %v512 = vsel %vm508, %v390, 0.0
        %v513 = vadd.f32 %v511, %v512
        %v514 = vsel %vm508, %v393, 0.0
        %v515 = vadd.f32 %v513, %v514
        %v516 = vsel %vm508, %v398, 0.0
        %v517 = vadd.f32 %v515, %v516
        %v518 = vsel %vm508, %v401, 0.0
        %v519 = vadd.f32 %v517, %v518
        %v520 = vsel %vm508, %v406, 0.0
        %v521 = vadd.f32 %v519, %v520
        %v522 = vsel %vm508, %v409, 0.0
        %v523 = vadd.f32 %v521, %v522
        %v524 = vsel %vm508, %v414, 0.0
        %v525 = vadd.f32 %v523, %v524
        %v526 = vsel %vm508, %v417, 0.0
        %v527 = vadd.f32 %v525, %v526
        %v528 = vsel %vm508, %v422, 0.0
        %v529 = vadd.f32 %v527, %v528
        %v530 = vsel %vm508, %v425, 0.0
        %v531 = vadd.f32 %v529, %v530
        %v532 = vsel %vm508, %v430, 0.0
        %v533 = vadd.f32 %v531, %v532
        %v534 = vsel %vm508, %v433, 0.0
        %v535 = vadd.f32 %v533, %v534
        %v536 = vsel %vm508, %v438, 0.0
        %v537 = vadd.f32 %v535, %v536
        %v538 = vsel %vm508, %v441, 0.0
        %v539 = vadd.f32 %v537, %v538
        %v540 = vsel %vm508, %v446, 0.0
        %v541 = vadd.f32 %v539, %v540
        %v542 = vsel %vm508, %v449, 0.0
        %v543 = vadd.f32 %v541, %v542
        %v544 = vsel %vm508, %v454, 0.0
        %v545 = vadd.f32 %v543, %v544
        %v546 = vsel %vm508, %v457, 0.0
        %v547 = vadd.f32 %v545, %v546
        %v548 = vsel %vm508, %v462, 0.0
        %v549 = vadd.f32 %v547, %v548
        %v550 = vsel %vm508, %v465, 0.0
        %v551 = vadd.f32 %v549, %v550
        %v552 = vsel %vm508, %v470, 0.0
        %v553 = vadd.f32 %v551, %v552
        %v554 = vsel %vm508, %v473, 0.0
        %v555 = vadd.f32 %v553, %v554
        %v556 = vsel %vm508, %v478, 0.0
        %v557 = vadd.f32 %v555, %v556
        %v558 = vsel %vm508, %v481, 0.0
        %v559 = vadd.f32 %v557, %v558
        %v560 = vsel %vm508, %v486, 0.0
        %v561 = vadd.f32 %v559, %v560
        %v562 = vsel %vm508, %v489, 0.0
        %v563 = vadd.f32 %v561, %v562
        %v564 = vsel %vm508, %v494, 0.0
        %v565 = vadd.f32 %v563, %v564
        %v566 = vsel %vm508, %v497, 0.0
        %v567 = vadd.f32 %v565, %v566
        %v568 = vsel %vm508, %v502, 0.0
        %v569 = vadd.f32 %v567, %v568
        %v570 = vsel %vm508, %v505, 0.0
        %v571 = vadd.f32 %v569, %v570
        %v572 = vrot.slane %v571, 4
        %v573 = vadd.f32 %v571, %v572
        %v574 = vrot.slane %v573, 2
        %v575 = vadd.f32 %v573, %v574
        %v576 = vrot.slane %v575, 1
        %v577 = vadd.f32 %v575, %v576
        %vm578 = vcmask 253952
        %579 = vst.msk [vmem:[%s167] sm:$0x1] %vm578, %v577
        %v580 = vmul.f32 %v382, %v382
        %v581 = vmul.f32 %v385, %v385
        %v582 = vmul.f32 %v390, %v390
        %v583 = vmul.f32 %v393, %v393
        %v584 = vmul.f32 %v398, %v398
        %v585 = vmul.f32 %v401, %v401
        %v586 = vmul.f32 %v406, %v406
        %v587 = vmul.f32 %v409, %v409
        %v588 = vmul.f32 %v414, %v414
        %v589 = vmul.f32 %v417, %v417
        %v590 = vmul.f32 %v422, %v422
        %v591 = vmul.f32 %v425, %v425
        %v592 = vmul.f32 %v430, %v430
        %v593 = vmul.f32 %v433, %v433
        %v594 = vmul.f32 %v438, %v438
        %v595 = vmul.f32 %v441, %v441
        %v596 = vmul.f32 %v446, %v446
        %v597 = vmul.f32 %v449, %v449
        %v598 = vmul.f32 %v454, %v454
        %v599 = vmul.f32 %v457, %v457
        %v600 = vmul.f32 %v462, %v462
        %v601 = vmul.f32 %v465, %v465
        %v602 = vmul.f32 %v470, %v470
        %v603 = vmul.f32 %v473, %v473
        %v604 = vmul.f32 %v478, %v478
        %v605 = vmul.f32 %v481, %v481
        %v606 = vmul.f32 %v486, %v486
        %v607 = vmul.f32 %v489, %v489
        %v608 = vmul.f32 %v494, %v494
        %v609 = vmul.f32 %v497, %v497
        %v610 = vmul.f32 %v502, %v502
        %v611 = vmul.f32 %v505, %v505
        %v612 = vsel %vm508, %v580, 0.0
        %v613 = vsel %vm508, %v581, 0.0
        %v614 = vadd.f32 %v612, %v613
        %v615 = vsel %vm508, %v582, 0.0
        %v616 = vadd.f32 %v614, %v615
        %v617 = vsel %vm508, %v583, 0.0
        %v618 = vadd.f32 %v616, %v617
        %v619 = vsel %vm508, %v584, 0.0
        %v620 = vadd.f32 %v618, %v619
        %v621 = vsel %vm508, %v585, 0.0
        %v622 = vadd.f32 %v620, %v621
        %v623 = vsel %vm508, %v586, 0.0
        %v624 = vadd.f32 %v622, %v623
        %v625 = vsel %vm508, %v587, 0.0
        %v626 = vadd.f32 %v624, %v625
        %v627 = vsel %vm508, %v588, 0.0
        %v628 = vadd.f32 %v626, %v627
        %v629 = vsel %vm508, %v589, 0.0
        %v630 = vadd.f32 %v628, %v629
        %v631 = vsel %vm508, %v590, 0.0
        %v632 = vadd.f32 %v630, %v631
        %v633 = vsel %vm508, %v591, 0.0
        %v634 = vadd.f32 %v632, %v633
        %v635 = vsel %vm508, %v592, 0.0
        %v636 = vadd.f32 %v634, %v635
        %v637 = vsel %vm508, %v593, 0.0
        %v638 = vadd.f32 %v636, %v637
        %v639 = vsel %vm508, %v594, 0.0
        %v640 = vadd.f32 %v638, %v639
        %v641 = vsel %vm508, %v595, 0.0
        %v642 = vadd.f32 %v640, %v641
        %v643 = vsel %vm508, %v596, 0.0
        %v644 = vadd.f32 %v642, %v643
        %v645 = vsel %vm508, %v597, 0.0
        %v646 = vadd.f32 %v644, %v645
        %v647 = vsel %vm508, %v598, 0.0
        %v648 = vadd.f32 %v646, %v647
        %v649 = vsel %vm508, %v599, 0.0
        %v650 = vadd.f32 %v648, %v649
        %v651 = vsel %vm508, %v600, 0.0
        %v652 = vadd.f32 %v650, %v651
        %v653 = vsel %vm508, %v601, 0.0
        %v654 = vadd.f32 %v652, %v653
        %v655 = vsel %vm508, %v602, 0.0
        %v656 = vadd.f32 %v654, %v655
        %v657 = vsel %vm508, %v603, 0.0
        %v658 = vadd.f32 %v656, %v657
        %v659 = vsel %vm508, %v604, 0.0
        %v660 = vadd.f32 %v658, %v659
        %v661 = vsel %vm508, %v605, 0.0
        %v662 = vadd.f32 %v660, %v661
        %v663 = vsel %vm508, %v606, 0.0
        %v664 = vadd.f32 %v662, %v663
        %v665 = vsel %vm508, %v607, 0.0
        %v666 = vadd.f32 %v664, %v665
        %v667 = vsel %vm508, %v608, 0.0
        %v668 = vadd.f32 %v666, %v667
        %v669 = vsel %vm508, %v609, 0.0
        %v670 = vadd.f32 %v668, %v669
        %v671 = vsel %vm508, %v610, 0.0
        %v672 = vadd.f32 %v670, %v671
        %v673 = vsel %vm508, %v611, 0.0
        %v674 = vadd.f32 %v672, %v673
        %v675 = vrot.slane %v674, 4
        %v676 = vadd.f32 %v674, %v675
        %v677 = vrot.slane %v676, 2
        %v678 = vadd.f32 %v676, %v677
        %v679 = vrot.slane %v678, 1
        %v680 = vadd.f32 %v678, %v679
        %681 = vst.msk [vmem:[%s173] sm:$0x1] %vm578, %v680
        %s682 = sand.u32 %s76, 1
        %s683 = scalar_lea.sflag [#allocation3], %s682
        %s684 = sand.u32 %s76, 1
        %s685 = scalar_lea.vmem [#allocation2], %s684
        %s686 = sand.u32 %s102, 1
        %s687 = scalar_lea.sflag [#allocation5], %s686
        %s688 = sand.u32 %s102, 1
        %s689 = scalar_lea.vmem [#allocation4], %s688
        // Predicated region
        $region29: #{tpu_custom_call.1} parent=27 // pred_check
          %p690 = pneg %p86
        $region30: #{tpu_custom_call.1} parent=27 // pred_check_branch
          %692 = sbr.rel (%p690) target = $region32
        $region31: #{tpu_custom_call.1} parent=27 // pred_region
          %s694 = ssub.s32 16, 16
          %695 = vsyncadd %s683, %s694
          %s696 = smul.addr %s21, 16
          %s697 = scalar_lea.hbm %s2, %s696
          %s699 = sshll.u32 %s685, 4
          %s700 = int_to_ptr.vmem [resolvable:$true] %s699
          %702 = dma.vmem_to_hbm [thread:$0]  %s700, 16, %s697, %s683
        $region32: #{tpu_custom_call.1} parent=27 // pred_fallthru
          _
        // Predicated region
        $region33: #{tpu_custom_call.1} parent=27 // pred_check
          %p703 = pneg %p112
        $region34: #{tpu_custom_call.1} parent=27 // pred_check_branch
          %705 = sbr.rel (%p703) target = $region36
        $region35: #{tpu_custom_call.1} parent=27 // pred_region
          %s707 = ssub.s32 16, 16
          %708 = vsyncadd %s687, %s707
          %s709 = smul.addr %s21, 16
          %s710 = scalar_lea.hbm %s3, %s709
          %s712 = sshll.u32 %s689, 4
          %s713 = int_to_ptr.vmem [resolvable:$true] %s712
          %715 = dma.vmem_to_hbm [thread:$0]  %s713, 16, %s710, %s687
        $region36: #{tpu_custom_call.1} parent=27 // pred_fallthru
          _
      $region28: #{tpu_custom_call.1} parent=5 // pred_fallthru
        _
      %p716 = scmp.le.s32.totalorder 2, %s16
      // Predicated region
      $region37: #{tpu_custom_call.1} parent=5 // pred_check
        %p717 = pneg %p716
      $region38: #{tpu_custom_call.1} parent=5 // pred_check_branch
        %719 = sbr.rel (%p717) target = $region40
      $region39: #{tpu_custom_call.1} parent=5 // pred_region
        %s720 = ssub.s32 %s16, 2
        // Predicated region
        $region41: #{tpu_custom_call.1} parent=39 // pred_check
          %p721 = pneg %p92
        $region42: #{tpu_custom_call.1} parent=39 // pred_check_branch
          %723 = sbr.rel (%p721) target = $region44
        $region43: #{tpu_custom_call.1} parent=39 // pred_region
          %s724 = sand.u32 %s77, 1
          %s725 = scalar_lea.sflag [#allocation3], %s724
          %s726 = sand.u32 %s77, 1
          %s727 = scalar_lea.vmem [#allocation2], %s726
          %728 = dma.done %s725, 16
        $region44: #{tpu_custom_call.1} parent=39 // pred_fallthru
          _
        // Predicated region
        $region45: #{tpu_custom_call.1} parent=39 // pred_check
          %p729 = pneg %p118
        $region46: #{tpu_custom_call.1} parent=39 // pred_check_branch
          %731 = sbr.rel (%p729) target = $region48
        $region47: #{tpu_custom_call.1} parent=39 // pred_region
          %s732 = sand.u32 %s103, 1
          %s733 = scalar_lea.sflag [#allocation5], %s732
          %s734 = sand.u32 %s103, 1
          %s735 = scalar_lea.vmem [#allocation4], %s734
          %736 = dma.done %s733, 16
        $region48: #{tpu_custom_call.1} parent=39 // pred_fallthru
          _
      $region40: #{tpu_custom_call.1} parent=5 // pred_fallthru
        _
    $region6: #{tpu_custom_call.1} parent=1 // loop_footer
      %s20 = sadd.s32 1, %s16
    $region7: #{tpu_custom_call.1} parent=1 // loop_footer_branch
      %15 = sbr.rel target = $region3
    $region8: #{tpu_custom_call.1} parent=1 // loop_exit
      _
    %737 = vsyncpa [#allocation3], 1
    %s738 = scalar_lea.sflag [#allocation3], 1
    %739 = vsyncpa %s738, 1
    %740 = vsyncpa [#allocation5], 1
    %s741 = scalar_lea.sflag [#allocation5], 1
    %742 = vsyncpa %s741, 1

</llo_original>
